<compile_context>
chip_gen: v6e
topology: v6e:2x2x1
jax: 0.10.0
libtpu: 0.0.40
codegen_flags: <defaults>
</compile_context>

<pallas_src>
import functools
import math

import jax
import jax.numpy as jnp
from jax.experimental import pallas as pl
from jax.experimental.pallas import tpu as pltpu

HIDDEN = 128 * 2      # 256, as in the PyTorch module
LANE = 128            # TPU lane width
SUBLANE = 8           # TPU sublane width
NEG_INF = -1e30       # bias for padded action columns (exp() underflows to exactly 0)


def _round_up(n, m):
    return ((n + m - 1) // m) * m


def dqn_kernel(x_ref, w1_ref, b1_ref, w2_ref, b2_ref, w3_ref, b3_ref, o_ref):
    """Full MLP + softmax for one batch tile; all operands resident in VMEM."""
    x = x_ref[...]

    # Layer 1: Linear + ReLU (MXU matmul, f32 accumulate).  K is padded only to 8.
    h1 = jnp.dot(x, w1_ref[...], preferred_element_type=jnp.float32) + b1_ref[...]
    h1 = jnp.maximum(h1, 0.0)

    # Layer 2: Linear + ReLU (the dominant 256x256 matmul).
    h2 = jnp.dot(h1.astype(w2_ref.dtype), w2_ref[...],
                 preferred_element_type=jnp.float32) + b2_ref[...]
    h2 = jnp.maximum(h2, 0.0)

    # Layer 3: Linear -> logits over the 128-lane padded action axis.  Padded columns
    # have zero weights and a -1e30 bias, so they vanish from the softmax below.
    logits = jnp.dot(h2.astype(w3_ref.dtype), w3_ref[...],
                     preferred_element_type=jnp.float32) + b3_ref[...]

    # Numerically stable softmax with an exact divide (rows sum to 1).
    m = jnp.max(logits, axis=-1, keepdims=True)
    e = jnp.exp(logits - m)
    denom = jnp.sum(e, axis=-1, keepdims=True)
    o_ref[...] = (e / denom).astype(o_ref.dtype)


def _choose_tiling(batch):
    """Static (shape-derived) batch tiling.

    * B <= 2048: one grid step, tile = B rounded to the sublane (8).
    * B  > 2048: 1024-row tiles, step count rounded up to an even number so the
      batch axis shards evenly across both v7x TensorCores (harmless on 1-TC chips).
    """
    if batch <= 2048:
        b_pad = _round_up(batch, SUBLANE)
        return b_pad, b_pad
    tile = 1024
    b_pad = _round_up(batch, tile)
    if (b_pad // tile) % 2:
        b_pad += tile
    return tile, b_pad


@functools.partial(jax.jit, static_argnames=("out_dim",))
def dqn_forward(x, padded_params, out_dim):
    """DQN forward pass.

    x: [B, input_dim] float32.
    padded_params: output of prepare_params() (weights already lane/sublane padded).
    Returns [B, out_dim] softmax probabilities (float32).
    """
    w1_p, b1, w2, b2, w3_p, b3_p = padded_params
    B, in_dim = x.shape
    in_pad = w1_p.shape[0]       # input_dim rounded up to 8
    out_pad = w3_p.shape[1]      # output_dim rounded up to 128

    batch_tile, b_pad = _choose_tiling(B)

    # Only the activations are padded per call; weights were padded once up front.
    x_p = jnp.pad(x, ((0, b_pad - B), (0, in_pad - in_dim)))

    grid = (b_pad // batch_tile,)

    # Weights/biases: same (full) block at every grid step; only x/out tile over batch.
    def full_spec(shape):
        return pl.BlockSpec(shape, lambda i: (0,) * len(shape))

    flops = 2 * b_pad * (in_pad * HIDDEN + HIDDEN * HIDDEN + HIDDEN * out_pad)
    transcendentals = b_pad * out_pad                       # exp
    bytes_accessed = 4 * (x_p.size + b_pad * out_pad) + sum(
        p.size * p.dtype.itemsize for p in padded_params)

    out = pl.pallas_call(
        dqn_kernel,
        out_shape=jax.ShapeDtypeStruct((b_pad, out_pad), jnp.float32),
        grid_spec=pltpu.PrefetchScalarGridSpec(
            num_scalar_prefetch=0,
            grid=grid,
            in_specs=[
                pl.BlockSpec((batch_tile, in_pad), lambda i: (i, 0)),
                full_spec(w1_p.shape),
                full_spec(b1.shape),
                full_spec(w2.shape),
                full_spec(b2.shape),
                full_spec(w3_p.shape),
                full_spec(b3_p.shape),
            ],
            out_specs=pl.BlockSpec((batch_tile, out_pad), lambda i: (i, 0)),
        ),
        compiler_params=pltpu.CompilerParams(
            dimension_semantics=("parallel",),
        ),
        cost_estimate=pl.CostEstimate(
            flops=flops,
            transcendentals=transcendentals,
            bytes_accessed=bytes_accessed,
        ),
    )(x_p, w1_p, b1, w2, b2, w3_p, b3_p)

    # Strip the batch / action padding.
    return out[:B, :out_dim]


def prepare_params(params, use_bf16=False):
    """One-time weight preparation (run OUTSIDE the per-call path).

    Pads the K axis of w1 to a sublane multiple (8) and the action axis of w3/b3 to a
    lane multiple (128).  w3 pad columns are zero and b3 pad columns are -1e30, which
    together make the padded logits exp() to exactly 0 in the softmax.
    Returns (padded_params, out_dim).
    """
    w1, b1, w2, b2, w3, b3 = params
    in_dim = w1.shape[0]
    out_dim = w3.shape[1]
    in_pad = _round_up(in_dim, SUBLANE)
    out_pad = _round_up(out_dim, LANE)

    w1_p = jnp.pad(w1, ((0, in_pad - in_dim), (0, 0)))
    w3_p = jnp.pad(w3, ((0, 0), (0, out_pad - out_dim)))
    b3_p = jnp.pad(b3, ((0, 0), (0, out_pad - out_dim)), constant_values=NEG_INF)

    padded = (w1_p, b1, w2, b2, w3_p, b3_p)
    if use_bf16:
        # Halves weight DMA and MXU passes; accumulation stays f32 in-kernel.
        padded = tuple(p.astype(jnp.bfloat16) for p in padded)
    return tuple(jax.device_put(p) for p in padded), out_dim


def init_params(key, input_dim, output_dim):
    """Deterministic init mimicking nn.Linear default: U(-1/sqrt(fan_in), 1/sqrt(fan_in)).
    Weights stored as [in, out] (transposed vs. PyTorch's [out, in]); biases as [1, out]."""
    dims = [(input_dim, HIDDEN), (HIDDEN, HIDDEN), (HIDDEN, output_dim)]
    params = []
    for fan_in, fan_out in dims:
        key, kw, kb = jax.random.split(key, 3)
        bound = 1.0 / math.sqrt(fan_in)
        w = jax.random.uniform(kw, (fan_in, fan_out), jnp.float32, -bound, bound)
        b = jax.random.uniform(kb, (1, fan_out), jnp.float32, -bound, bound)
        params += [w, b]
    return tuple(params)


def dqn_reference(x, params):
    """Pure-JAX reference for correctness check."""
    w1, b1, w2, b2, w3, b3 = params
    h1 = jnp.maximum(x @ w1 + b1, 0.0)
    h2 = jnp.maximum(h1 @ w2 + b2, 0.0)
    return jax.nn.softmax(h2 @ w3 + b3, axis=-1)


if __name__ == "__main__":
    key = jax.random.PRNGKey(0)

    # Pendulum-like shapes: state dim 3, 5 discretized actions, small batch.
    batch, input_dim, output_dim = 32, 3, 5

    key, kx = jax.random.split(key)
    x = jax.random.normal(kx, (batch, input_dim), jnp.float32)
    params = init_params(key, input_dim, output_dim)

    # Pad weights ONCE, outside the per-call jitted path.
    padded_params, out_dim = prepare_params(params, use_bf16=False)

    out = jax.block_until_ready(dqn_forward(x, padded_params, out_dim))
    ref = dqn_reference(x, params)

    assert out.shape == (batch, output_dim)
    assert jnp.allclose(out, ref, atol=1e-5, rtol=1e-5), "mismatch vs JAX reference"
    assert jnp.allclose(jnp.sum(out, axis=-1), 1.0, atol=1e-5)

    # Exercise a batch that is not a multiple of the sublane (tail padding path).
    out_small = jax.block_until_ready(dqn_forward(x[:7], padded_params, out_dim))
    assert out_small.shape == (7, output_dim)
    assert jnp.allclose(out_small, ref[:7], atol=1e-5, rtol=1e-5)

    # TODO(synk): torch.load/torch.save state-dict persistence is host-side file I/O
    # with no kernel equivalent; weights are passed in as arrays instead.
    print("KERNEL_OK")
</pallas_src>

<mosaic_0001>
module attributes {stable_mosaic.version = 11 : i64} {
  func.func @dqn_kernel(%arg0: i32, %arg1: memref<32x8xf32, #tpu.memory_space<vmem>>, %arg2: memref<8x256xf32, #tpu.memory_space<vmem>>, %arg3: memref<1x256xf32, #tpu.memory_space<vmem>>, %arg4: memref<256x256xf32, #tpu.memory_space<vmem>>, %arg5: memref<1x256xf32, #tpu.memory_space<vmem>>, %arg6: memref<256x128xf32, #tpu.memory_space<vmem>>, %arg7: memref<1x128xf32, #tpu.memory_space<vmem>>, %arg8: memref<32x128xf32, #tpu.memory_space<vmem>>) attributes {dimension_semantics = [#tpu.dimension_semantics<parallel>], iteration_bounds = array<i64: 1>, scalar_prefetch = 0 : i64, scratch_operands = 0 : i64, tpu.core_type = #tpu.core_type<tc>, window_params = [{transform_indices = @transform_0, window_bounds = array<i64: 32, 8>}, {pipeline_mode = #tpu.pipeline_mode<synchronous>, transform_indices = @transform_1, window_bounds = array<i64: 8, 256>}, {pipeline_mode = #tpu.pipeline_mode<synchronous>, transform_indices = @transform_2, window_bounds = array<i64: 1, 256>}, {pipeline_mode = #tpu.pipeline_mode<synchronous>, transform_indices = @transform_3, window_bounds = array<i64: 256, 256>}, {pipeline_mode = #tpu.pipeline_mode<synchronous>, transform_indices = @transform_4, window_bounds = array<i64: 1, 256>}, {pipeline_mode = #tpu.pipeline_mode<synchronous>, transform_indices = @transform_5, window_bounds = array<i64: 256, 128>}, {pipeline_mode = #tpu.pipeline_mode<synchronous>, transform_indices = @transform_6, window_bounds = array<i64: 1, 128>}, {transform_indices = @transform_7, window_bounds = array<i64: 32, 128>}]} {
    %c0 = arith.constant 0 : index
    %c0_0 = arith.constant 0 : index
    %0 = vector.load %arg1[%c0, %c0_0] : memref<32x8xf32, #tpu.memory_space<vmem>>, vector<32x8xf32>
    %c0_1 = arith.constant 0 : index
    %c0_2 = arith.constant 0 : index
    %1 = vector.load %arg2[%c0_1, %c0_2] : memref<8x256xf32, #tpu.memory_space<vmem>>, vector<8x256xf32>
    %cst = arith.constant dense<0.000000e+00> : vector<32x256xf32>
    %2 = tpu.matmul %0, %1, %cst {dimension_numbers = #tpu.dot_dimension_numbers<[1], [0], [0], [1], [0, 0, 1, 1], [], []>} : vector<32x8xf32>, vector<8x256xf32>, vector<32x256xf32> -> vector<32x256xf32>
    %c0_3 = arith.constant 0 : index
    %c0_4 = arith.constant 0 : index
    %3 = vector.load %arg3[%c0_3, %c0_4] : memref<1x256xf32, #tpu.memory_space<vmem>>, vector<1x256xf32>
    %4 = vector.broadcast %3 : vector<1x256xf32> to vector<32x256xf32>
    %5 = arith.addf %2, %4 : vector<32x256xf32>
    %cst_5 = arith.constant 0.000000e+00 : f32
    %6 = vector.broadcast %cst_5 : f32 to vector<32x256xf32>
    %7 = arith.maximumf %5, %6 : vector<32x256xf32>
    %c0_6 = arith.constant 0 : index
    %c0_7 = arith.constant 0 : index
    %8 = vector.load %arg4[%c0_6, %c0_7] : memref<256x256xf32, #tpu.memory_space<vmem>>, vector<256x256xf32>
    %cst_8 = arith.constant dense<0.000000e+00> : vector<32x256xf32>
    %9 = tpu.matmul %7, %8, %cst_8 {dimension_numbers = #tpu.dot_dimension_numbers<[1], [0], [0], [1], [0, 0, 1, 1], [], []>} : vector<32x256xf32>, vector<256x256xf32>, vector<32x256xf32> -> vector<32x256xf32>
    %c0_9 = arith.constant 0 : index
    %c0_10 = arith.constant 0 : index
    %10 = vector.load %arg5[%c0_9, %c0_10] : memref<1x256xf32, #tpu.memory_space<vmem>>, vector<1x256xf32>
    %11 = vector.broadcast %10 : vector<1x256xf32> to vector<32x256xf32>
    %12 = arith.addf %9, %11 : vector<32x256xf32>
    %cst_11 = arith.constant 0.000000e+00 : f32
    %13 = vector.broadcast %cst_11 : f32 to vector<32x256xf32>
    %14 = arith.maximumf %12, %13 : vector<32x256xf32>
    %c0_12 = arith.constant 0 : index
    %c0_13 = arith.constant 0 : index
    %15 = vector.load %arg6[%c0_12, %c0_13] : memref<256x128xf32, #tpu.memory_space<vmem>>, vector<256x128xf32>
    %cst_14 = arith.constant dense<0.000000e+00> : vector<32x128xf32>
    %16 = tpu.matmul %14, %15, %cst_14 {dimension_numbers = #tpu.dot_dimension_numbers<[1], [0], [0], [1], [0, 0, 1, 1], [], []>} : vector<32x256xf32>, vector<256x128xf32>, vector<32x128xf32> -> vector<32x128xf32>
    %c0_15 = arith.constant 0 : index
    %c0_16 = arith.constant 0 : index
    %17 = vector.load %arg7[%c0_15, %c0_16] : memref<1x128xf32, #tpu.memory_space<vmem>>, vector<1x128xf32>
    %18 = vector.broadcast %17 : vector<1x128xf32> to vector<32x128xf32>
    %19 = arith.addf %16, %18 : vector<32x128xf32>
    %cst_17 = arith.constant dense<0xFF800000> : vector<32xf32>
    %20 = vector.multi_reduction <maximumf>, %19, %cst_17 [1] : vector<32x128xf32> to vector<32xf32>
    %21 = vector.shape_cast %20 : vector<32xf32> to vector<32x1xf32>
    %22 = vector.broadcast %21 : vector<32x1xf32> to vector<32x128xf32>
    %23 = arith.subf %19, %22 : vector<32x128xf32>
    %24 = math.exp %23 : vector<32x128xf32>
    %cst_18 = arith.constant dense<0.000000e+00> : vector<32xf32>
    %25 = vector.multi_reduction <add>, %24, %cst_18 [1] : vector<32x128xf32> to vector<32xf32>
    %26 = vector.shape_cast %25 : vector<32xf32> to vector<32x1xf32>
    %27 = vector.broadcast %26 : vector<32x1xf32> to vector<32x128xf32>
    %28 = arith.divf %24, %27 : vector<32x128xf32>
    %c0_19 = arith.constant 0 : index
    %c0_20 = arith.constant 0 : index
    %29 = vector.load %arg8[%c0_19, %c0_20] : memref<32x128xf32, #tpu.memory_space<vmem>>, vector<32x128xf32>
    tpu.vector_store %arg8[%c0_19, %c0_20], %28 {strides = array<i32>} : memref<32x128xf32, #tpu.memory_space<vmem>>, vector<32x128xf32>,
    return
  }
  func.func @transform_0(%arg0: i32) -> (i32, i32) {
    %c0_i32 = arith.constant 0 : i32
    %c0_i32_0 = arith.constant 0 : i32
    return %arg0, %c0_i32 : i32, i32
  }
  func.func @transform_1(%arg0: i32) -> (i32, i32) {
    %c0_i32 = arith.constant 0 : i32
    %c0_i32_0 = arith.constant 0 : i32
    %c0_i32_1 = arith.constant 0 : i32
    return %c0_i32, %c0_i32_0 : i32, i32
  }
  func.func @transform_2(%arg0: i32) -> (i32, i32) {
    %c0_i32 = arith.constant 0 : i32
    %c0_i32_0 = arith.constant 0 : i32
    %c0_i32_1 = arith.constant 0 : i32
    return %c0_i32, %c0_i32_0 : i32, i32
  }
  func.func @transform_3(%arg0: i32) -> (i32, i32) {
    %c0_i32 = arith.constant 0 : i32
    %c0_i32_0 = arith.constant 0 : i32
    %c0_i32_1 = arith.constant 0 : i32
    return %c0_i32, %c0_i32_0 : i32, i32
  }
  func.func @transform_4(%arg0: i32) -> (i32, i32) {
    %c0_i32 = arith.constant 0 : i32
    %c0_i32_0 = arith.constant 0 : i32
    %c0_i32_1 = arith.constant 0 : i32
    return %c0_i32, %c0_i32_0 : i32, i32
  }
  func.func @transform_5(%arg0: i32) -> (i32, i32) {
    %c0_i32 = arith.constant 0 : i32
    %c0_i32_0 = arith.constant 0 : i32
    %c0_i32_1 = arith.constant 0 : i32
    return %c0_i32, %c0_i32_0 : i32, i32
  }
  func.func @transform_6(%arg0: i32) -> (i32, i32) {
    %c0_i32 = arith.constant 0 : i32
    %c0_i32_0 = arith.constant 0 : i32
    %c0_i32_1 = arith.constant 0 : i32
    return %c0_i32, %c0_i32_0 : i32, i32
  }
  func.func @transform_7(%arg0: i32) -> (i32, i32) {
    %c0_i32 = arith.constant 0 : i32
    %c0_i32_0 = arith.constant 0 : i32
    return %arg0, %c0_i32 : i32, i32
  }
}

</mosaic_0001>

<llo_original>
// kernel: dqn_forward.1
$region0: #{dqn_forward.1}
  #allocation0 [shape = 'u32[]', space=smem, size = 0x4, offset = 0x4, fixed_abs, tag = 'smem constant byte address 0x4 - core index']
  #allocation1 [shape = 'u32[144,128]{1,0:T(1,128)}', space=vmem, size = 0x12000, scoped, tag = 'internal scratch']
  %s0 = inlined_call_operand.vmem [shape: f32[32,8], index: 0, kind: input, shape index: {}]
  %s1 = inlined_call_operand.vmem [shape: f32[8,256], index: 1, kind: input, shape index: {}]
  %s2 = inlined_call_operand.vmem [shape: f32[1,256], index: 2, kind: input, shape index: {}]
  %s3 = inlined_call_operand.hbm [shape: f32[256,256], index: 3, kind: input, shape index: {}]
  %s4 = inlined_call_operand.vmem [shape: f32[1,256], index: 4, kind: input, shape index: {}]
  %s5 = inlined_call_operand.hbm [shape: f32[256,128], index: 5, kind: input, shape index: {}]
  %s6 = inlined_call_operand.vmem [shape: f32[1,128], index: 6, kind: input, shape index: {}]
  %s7 = inlined_call_operand.vmem [shape: f32[32,128], index: 7, kind: output, shape index: {}]
  %s8 = sld [smem:[#allocation0]]
  $region46: #{dqn_forward.1} parent=0
    _
  %s10 = ssub.s32 1, %s8
  %s11 = scalar_select 0, %s10, %s8
  $region1: #{dqn_forward.1} parent=0
    #allocation2 [shape = 'u8[262144]{0}', space=vmem, size = 0x40000, scoped, tag = 'input window, operand 3, single buffered']
    #allocation3 [shape = 's32[1]{0}', space=sflag, size = 0x4, scoped, tag = 'scoped memory for dqn_forward.1']
    #allocation4 [shape = 'u8[131072]{0}', space=vmem, size = 0x20000, scoped, tag = 'input window, operand 5, single buffered']
    #allocation5 [shape = 's32[1]{0}', space=sflag, size = 0x4, scoped, tag = 'scoped memory for dqn_forward.1']
    %12 = vsyncpa [#allocation3], 0
    %13 = vsyncpa [#allocation5], 0
    // Predicated region
    $region2: #{dqn_forward.1} parent=1 // pred_check
      _
    $region3: #{dqn_forward.1} parent=1 // pred_check_branch
      %15 = sbr.rel (0) target = $region5
    $region4: #{dqn_forward.1} parent=1 // pred_region
      _
    $region5: #{dqn_forward.1} parent=1 // pred_fallthru
      _
    // Predicated region
    $region6: #{dqn_forward.1} parent=1 // pred_check
      _
    $region7: #{dqn_forward.1} parent=1 // pred_check_branch
      %17 = sbr.rel (0) target = $region9
    $region8: #{dqn_forward.1} parent=1 // pred_region
      _
    $region9: #{dqn_forward.1} parent=1 // pred_fallthru
      _
    // Predicated region
    $region10: #{dqn_forward.1} parent=1 // pred_check
      _
    $region11: #{dqn_forward.1} parent=1 // pred_check_branch
      %19 = sbr.rel (0) target = $region13
    $region12: #{dqn_forward.1} parent=1 // pred_region
      _
    $region13: #{dqn_forward.1} parent=1 // pred_fallthru
      _
    // Predicated region
    $region14: #{dqn_forward.1} parent=1 // pred_check
      _
    $region15: #{dqn_forward.1} parent=1 // pred_check_branch
      %21 = sbr.rel (0) target = $region17
    $region16: #{dqn_forward.1} parent=1 // pred_region
      %s23 = ssub.s32 8192, 8192
      %24 = vsyncadd [#allocation3], %s23
      %s25 = sshll.u32 [#allocation2], 4
      %s26 = int_to_ptr.vmem [resolvable:$true] %s25
      %31 = dma.hbm_to_vmem [thread:$0]  %s3, 8192, %s26, [#allocation3], 256, 256, 16
    $region17: #{dqn_forward.1} parent=1 // pred_fallthru
      _
    // Predicated region
    $region18: #{dqn_forward.1} parent=1 // pred_check
      _
    $region19: #{dqn_forward.1} parent=1 // pred_check_branch
      %33 = sbr.rel (0) target = $region21
    $region20: #{dqn_forward.1} parent=1 // pred_region
      _
    $region21: #{dqn_forward.1} parent=1 // pred_fallthru
      _
    // Predicated region
    $region22: #{dqn_forward.1} parent=1 // pred_check
      _
    $region23: #{dqn_forward.1} parent=1 // pred_check_branch
      %35 = sbr.rel (0) target = $region25
    $region24: #{dqn_forward.1} parent=1 // pred_region
      %s37 = ssub.s32 4096, 4096
      %38 = vsyncadd [#allocation5], %s37
      %s39 = sshll.u32 [#allocation4], 4
      %s40 = int_to_ptr.vmem [resolvable:$true] %s39
      %45 = dma.hbm_to_vmem [thread:$0]  %s5, 4096, %s40, [#allocation5], 128, 128, 8
    $region25: #{dqn_forward.1} parent=1 // pred_fallthru
      _
    // Predicated region
    $region26: #{dqn_forward.1} parent=1 // pred_check
      _
    $region27: #{dqn_forward.1} parent=1 // pred_check_branch
      %47 = sbr.rel (0) target = $region29
    $region28: #{dqn_forward.1} parent=1 // pred_region
      _
    $region29: #{dqn_forward.1} parent=1 // pred_fallthru
      _
    // Predicated region
    $region30: #{dqn_forward.1} parent=1 // pred_check
      _
    $region31: #{dqn_forward.1} parent=1 // pred_check_branch
      %49 = sbr.rel (0) target = $region33
    $region32: #{dqn_forward.1} parent=1 // pred_region
      %50 = dma.done [#allocation3], 8192
    $region33: #{dqn_forward.1} parent=1 // pred_fallthru
      _
    // Predicated region
    $region34: #{dqn_forward.1} parent=1 // pred_check
      _
    $region35: #{dqn_forward.1} parent=1 // pred_check_branch
      %52 = sbr.rel (0) target = $region37
    $region36: #{dqn_forward.1} parent=1 // pred_region
      %53 = dma.done [#allocation5], 4096
    $region37: #{dqn_forward.1} parent=1 // pred_fallthru
      _
    %v54 = vld [vmem:[%s0] sm:$0xff]
    %v55 = vld [vmem:[%s0 + $0x8] sm:$0xff]
    %v56 = vld [vmem:[%s0 + $0x10] sm:$0xff]
    %v57 = vld [vmem:[%s0 + $0x18] sm:$0xff]
    %v58 = vld [vmem:[%s1] sm:$0xff]
    %v59 = vld [vmem:[%s1 + $0x8] sm:$0xff]
    %v60 = vld [vmem:[%s2] sm:$0x3]
    %v62 = vlaneseq
    %v63 = vshrl.u32 %v62, 7
    %v64 = vsub.s32 0, %v63
    %v65 = vrot.slane %v60, %v64
    %v66 = vlaneseq
    %v67 = vshrl.u32 %v66, 7
    %v68 = vsub.s32 1, %v67
    %v69 = vrot.slane %v60, %v68
    %vm72 = vcmask 64512
    %v74 = vsel %vm72, %v54, 0
    %v77 = vsel %vm72, %v55, 0
    %v80 = vsel %vm72, %v56, 0
    %v83 = vsel %vm72, %v57, 0
    %85 = vmatprep.subr.mxu0 0.0
    %86 = vmatpush1.msra.mxu0 0.0
    %87 = vmatprep.subr.mxu0 0.0
    %88 = vmatpush1.msra.mxu0 0.0
    %89 = vmatprep.subr.mxu0 0.0
    %90 = vmatpush1.msra.mxu0 0.0
    %91 = vmatprep.subr.mxu0 0.0
    %92 = vmatpush1.msra.mxu0 0.0
    %93 = vmatprep.subr.mxu0 0.0
    %94 = vmatpush1.msra.mxu0 0.0
    %95 = vmatprep.subr.mxu0 0.0
    %96 = vmatpush1.msra.mxu0 0.0
    %97 = vmatprep.subr.mxu0 0.0
    %98 = vmatpush1.msra.mxu0 0.0
    %99 = vmatprep.subr.mxu0 0.0
    %100 = vmatpush1.msra.mxu0 0.0
    %101 = vmatprep.subr.mxu0 0.0
    %102 = vmatpush1.msra.mxu0 0.0
    %103 = vmatprep.subr.mxu0 0.0
    %104 = vmatpush1.msra.mxu0 0.0
    %105 = vmatprep.subr.mxu0 0.0
    %106 = vmatpush1.msra.mxu0 0.0
    %107 = vmatprep.subr.mxu0 0.0
    %108 = vmatpush1.msra.mxu0 0.0
    %109 = vmatprep.subr.mxu0 0.0
    %110 = vmatpush1.msra.mxu0 0.0
    %111 = vmatprep.subr.mxu0 0.0
    %112 = vmatpush1.msra.mxu0 0.0
    %113 = vmatprep.subr.mxu0 0.0
    %114 = vmatpush1.msra.mxu0 0.0
    %115 = vmatprep.subr.mxu0 %v59
    %116 = vmatpush1.msra.mxu0 %v58
    %117 = vmatprep.subr.mxu0 0.0
    %118 = vmatpush2.msra.mxu0 0.0
    %119 = vmatprep.subr.mxu0 0.0
    %120 = vmatpush2.msra.mxu0 0.0
    %121 = vmatprep.subr.mxu0 0.0
    %122 = vmatpush2.msra.mxu0 0.0
    %123 = vmatprep.subr.mxu0 0.0
    %124 = vmatpush2.msra.mxu0 0.0
    %125 = vmatprep.subr.mxu0 0.0
    %126 = vmatpush2.msra.mxu0 0.0
    %127 = vmatprep.subr.mxu0 0.0
    %128 = vmatpush2.msra.mxu0 0.0
    %129 = vmatprep.subr.mxu0 0.0
    %130 = vmatpush2.msra.mxu0 0.0
    %131 = vmatprep.subr.mxu0 0.0
    %132 = vmatpush2.msra.mxu0 0.0
    %133 = vmatprep.subr.mxu0 0.0
    %134 = vmatpush2.msra.mxu0 0.0
    %135 = vmatprep.subr.mxu0 0.0
    %136 = vmatpush2.msra.mxu0 0.0
    %137 = vmatprep.subr.mxu0 0.0
    %138 = vmatpush2.msra.mxu0 0.0
    %139 = vmatprep.subr.mxu0 0.0
    %140 = vmatpush2.msra.mxu0 0.0
    %141 = vmatprep.subr.mxu0 0.0
    %142 = vmatpush2.msra.mxu0 0.0
    %143 = vmatprep.subr.mxu0 0.0
    %144 = vmatpush2.msra.mxu0 0.0
    %145 = vmatprep.subr.mxu0 0.0
    %146 = vmatpush2.msra.mxu0 0.0
    %147 = vmatprep.subr.mxu0 0.0
    %148 = vmatpush2.msra.mxu0 0.0
    %149 = vmatprep.mubr.f32.mxu0 0.0
    %150 = vmatmul.mubr.f32.gmra.mxu0 %v74
    %v151 = vpop.f32.mrf.mxu0
    %v152 = vadd.f32 %v65, %v151
    %v153 = vpop.f32.mrf.mxu0
    %v154 = vadd.f32 %v69, %v153
    %155 = vmatprep.mubr.f32.mxu0 0.0
    %156 = vmatmul.mubr.f32.gmra.mxu0 %v77
    %v157 = vpop.f32.mrf.mxu0
    %v158 = vadd.f32 %v65, %v157
    %v159 = vpop.f32.mrf.mxu0
    %v160 = vadd.f32 %v69, %v159
    %161 = vmatprep.mubr.f32.mxu0 0.0
    %162 = vmatmul.mubr.f32.gmra.mxu0 %v80
    %v163 = vpop.f32.mrf.mxu0
    %v164 = vadd.f32 %v65, %v163
    %v165 = vpop.f32.mrf.mxu0
    %v166 = vadd.f32 %v69, %v165
    %167 = vmatprep.mubr.f32.mxu0 0.0
    %168 = vmatmul.mubr.f32.gmra.mxu0 %v83
    %v169 = vpop.f32.mrf.mxu0
    %v170 = vadd.f32 %v65, %v169
    %v171 = vpop.f32.mrf.mxu0
    %v172 = vadd.f32 %v69, %v171
    %173 = vdwg.mxu0
    %v174 = vmax.f32 %v152, 0.0
    %v175 = vmax.f32 %v154, 0.0
    %v176 = vmax.f32 %v158, 0.0
    %v177 = vmax.f32 %v160, 0.0
    %v178 = vmax.f32 %v164, 0.0
    %v179 = vmax.f32 %v166, 0.0
    %v180 = vmax.f32 %v170, 0.0
    %v181 = vmax.f32 %v172, 0.0
    %v182 = vld [vmem:[#allocation2] sm:$0xff]
    %v183 = vld [vmem:[#allocation2 + $0x8] sm:$0xff]
    %v184 = vld [vmem:[#allocation2 + $0x10] sm:$0xff]
    %v185 = vld [vmem:[#allocation2 + $0x18] sm:$0xff]
    %v186 = vld [vmem:[#allocation2 + $0x20] sm:$0xff]
    %v187 = vld [vmem:[#allocation2 + $0x28] sm:$0xff]
    %v188 = vld [vmem:[#allocation2 + $0x30] sm:$0xff]
    %v189 = vld [vmem:[#allocation2 + $0x38] sm:$0xff]
    %v190 = vld [vmem:[#allocation2 + $0x40] sm:$0xff]
    %v191 = vld [vmem:[#allocation2 + $0x48] sm:$0xff]
    %v192 = vld [vmem:[#allocation2 + $0x50] sm:$0xff]
    %v193 = vld [vmem:[#allocation2 + $0x58] sm:$0xff]
    %v194 = vld [vmem:[#allocation2 + $0x60] sm:$0xff]
    %v195 = vld [vmem:[#allocation2 + $0x68] sm:$0xff]
    %v196 = vld [vmem:[#allocation2 + $0x70] sm:$0xff]
    %v197 = vld [vmem:[#allocation2 + $0x78] sm:$0xff]
    %v198 = vld [vmem:[#allocation2 + $0x80] sm:$0xff]
    %v199 = vld [vmem:[#allocation2 + $0x88] sm:$0xff]
    %v200 = vld [vmem:[#allocation2 + $0x90] sm:$0xff]
    %v201 = vld [vmem:[#allocation2 + $0x98] sm:$0xff]
    %v202 = vld [vmem:[#allocation2 + $0xa0] sm:$0xff]
    %v203 = vld [vmem:[#allocation2 + $0xa8] sm:$0xff]
    %v204 = vld [vmem:[#allocation2 + $0xb0] sm:$0xff]
    %v205 = vld [vmem:[#allocation2 + $0xb8] sm:$0xff]
    %v206 = vld [vmem:[#allocation2 + $0xc0] sm:$0xff]
    %v207 = vld [vmem:[#allocation2 + $0xc8] sm:$0xff]
    %v208 = vld [vmem:[#allocation2 + $0xd0] sm:$0xff]
    %v209 = vld [vmem:[#allocation2 + $0xd8] sm:$0xff]
    %v210 = vld [vmem:[#allocation2 + $0xe0] sm:$0xff]
    %v211 = vld [vmem:[#allocation2 + $0xe8] sm:$0xff]
    %v212 = vld [vmem:[#allocation2 + $0xf0] sm:$0xff]
    %v213 = vld [vmem:[#allocation2 + $0xf8] sm:$0xff]
    %v214 = vld [vmem:[#allocation2 + $0x100] sm:$0xff]
    %v215 = vld [vmem:[#allocation2 + $0x108] sm:$0xff]
    %v216 = vld [vmem:[#allocation2 + $0x110] sm:$0xff]
    %v217 = vld [vmem:[#allocation2 + $0x118] sm:$0xff]
    %v218 = vld [vmem:[#allocation2 + $0x120] sm:$0xff]
    %v219 = vld [vmem:[#allocation2 + $0x128] sm:$0xff]
    %v220 = vld [vmem:[#allocation2 + $0x130] sm:$0xff]
    %v221 = vld [vmem:[#allocation2 + $0x138] sm:$0xff]
    %v222 = vld [vmem:[#allocation2 + $0x140] sm:$0xff]
    %v223 = vld [vmem:[#allocation2 + $0x148] sm:$0xff]
    %v224 = vld [vmem:[#allocation2 + $0x150] sm:$0xff]
    %v225 = vld [vmem:[#allocation2 + $0x158] sm:$0xff]
    %v226 = vld [vmem:[#allocation2 + $0x160] sm:$0xff]
    %v227 = vld [vmem:[#allocation2 + $0x168] sm:$0xff]
    %v228 = vld [vmem:[#allocation2 + $0x170] sm:$0xff]
    %v229 = vld [vmem:[#allocation2 + $0x178] sm:$0xff]
    %v230 = vld [vmem:[#allocation2 + $0x180] sm:$0xff]
    %v231 = vld [vmem:[#allocation2 + $0x188] sm:$0xff]
    %v232 = vld [vmem:[#allocation2 + $0x190] sm:$0xff]
    %v233 = vld [vmem:[#allocation2 + $0x198] sm:$0xff]
    %v234 = vld [vmem:[#allocation2 + $0x1a0] sm:$0xff]
    %v235 = vld [vmem:[#allocation2 + $0x1a8] sm:$0xff]
    %v236 = vld [vmem:[#allocation2 + $0x1b0] sm:$0xff]
    %v237 = vld [vmem:[#allocation2 + $0x1b8] sm:$0xff]
    %v238 = vld [vmem:[#allocation2 + $0x1c0] sm:$0xff]
    %v239 = vld [vmem:[#allocation2 + $0x1c8] sm:$0xff]
    %v240 = vld [vmem:[#allocation2 + $0x1d0] sm:$0xff]
    %v241 = vld [vmem:[#allocation2 + $0x1d8] sm:$0xff]
    %v242 = vld [vmem:[#allocation2 + $0x1e0] sm:$0xff]
    %v243 = vld [vmem:[#allocation2 + $0x1e8] sm:$0xff]
    %v244 = vld [vmem:[#allocation2 + $0x1f0] sm:$0xff]
    %v245 = vld [vmem:[#allocation2 + $0x1f8] sm:$0xff]
    %v246 = vld [vmem:[%s4] sm:$0x3]
    %v248 = vlaneseq
    %v249 = vshrl.u32 %v248, 7
    %v250 = vsub.s32 0, %v249
    %v251 = vrot.slane %v246, %v250
    %v252 = vlaneseq
    %v253 = vshrl.u32 %v252, 7
    %v254 = vsub.s32 1, %v253
    %v255 = vrot.slane %v246, %v254
    %258 = vmatprep.subr.mxu0 %v213
    %259 = vmatpush1.msra.mxu0 %v212
    %260 = vmatprep.subr.mxu0 %v211
    %261 = vmatpush1.msra.mxu0 %v210
    %262 = vmatprep.subr.mxu0 %v209
    %263 = vmatpush1.msra.mxu0 %v208
    %264 = vmatprep.subr.mxu0 %v207
    %265 = vmatpush1.msra.mxu0 %v206
    %266 = vmatprep.subr.mxu0 %v205
    %267 = vmatpush1.msra.mxu0 %v204
    %268 = vmatprep.subr.mxu0 %v203
    %269 = vmatpush1.msra.mxu0 %v202
    %270 = vmatprep.subr.mxu0 %v201
    %271 = vmatpush1.msra.mxu0 %v200
    %272 = vmatprep.subr.mxu0 %v199
    %273 = vmatpush1.msra.mxu0 %v198
    %274 = vmatprep.subr.mxu0 %v197
    %275 = vmatpush1.msra.mxu0 %v196
    %276 = vmatprep.subr.mxu0 %v195
    %277 = vmatpush1.msra.mxu0 %v194
    %278 = vmatprep.subr.mxu0 %v193
    %279 = vmatpush1.msra.mxu0 %v192
    %280 = vmatprep.subr.mxu0 %v191
    %281 = vmatpush1.msra.mxu0 %v190
    %282 = vmatprep.subr.mxu0 %v189
    %283 = vmatpush1.msra.mxu0 %v188
    %284 = vmatprep.subr.mxu0 %v187
    %285 = vmatpush1.msra.mxu0 %v186
    %286 = vmatprep.subr.mxu0 %v185
    %287 = vmatpush1.msra.mxu0 %v184
    %288 = vmatprep.subr.mxu0 %v183
    %289 = vmatpush1.msra.mxu0 %v182
    %290 = vmatprep.subr.mxu0 %v245
    %291 = vmatpush2.msra.mxu0 %v244
    %292 = vmatprep.subr.mxu0 %v243
    %293 = vmatpush2.msra.mxu0 %v242
    %294 = vmatprep.subr.mxu0 %v241
    %295 = vmatpush2.msra.mxu0 %v240
    %296 = vmatprep.subr.mxu0 %v239
    %297 = vmatpush2.msra.mxu0 %v238
    %298 = vmatprep.subr.mxu0 %v237
    %299 = vmatpush2.msra.mxu0 %v236
    %300 = vmatprep.subr.mxu0 %v235
    %301 = vmatpush2.msra.mxu0 %v234
    %302 = vmatprep.subr.mxu0 %v233
    %303 = vmatpush2.msra.mxu0 %v232
    %304 = vmatprep.subr.mxu0 %v231
    %305 = vmatpush2.msra.mxu0 %v230
    %306 = vmatprep.subr.mxu0 %v229
    %307 = vmatpush2.msra.mxu0 %v228
    %308 = vmatprep.subr.mxu0 %v227
    %309 = vmatpush2.msra.mxu0 %v226
    %310 = vmatprep.subr.mxu0 %v225
    %311 = vmatpush2.msra.mxu0 %v224
    %312 = vmatprep.subr.mxu0 %v223
    %313 = vmatpush2.msra.mxu0 %v222
    %314 = vmatprep.subr.mxu0 %v221
    %315 = vmatpush2.msra.mxu0 %v220
    %316 = vmatprep.subr.mxu0 %v219
    %317 = vmatpush2.msra.mxu0 %v218
    %318 = vmatprep.subr.mxu0 %v217
    %319 = vmatpush2.msra.mxu0 %v216
    %320 = vmatprep.subr.mxu0 %v215
    %321 = vmatpush2.msra.mxu0 %v214
    %322 = vmatprep.mubr.f32.mxu0 %v175
    %323 = vmatmul.mubr.f32.gmra.mxu0 %v174
    %v324 = vpop.f32.mrf.mxu0
    %v325 = vadd.f32 %v251, %v324
    %v326 = vpop.f32.mrf.mxu0
    %v327 = vadd.f32 %v255, %v326
    %328 = vmatprep.mubr.f32.mxu0 %v177
    %329 = vmatmul.mubr.f32.gmra.mxu0 %v176
    %v330 = vpop.f32.mrf.mxu0
    %v331 = vadd.f32 %v251, %v330
    %v332 = vpop.f32.mrf.mxu0
    %v333 = vadd.f32 %v255, %v332
    %334 = vmatprep.mubr.f32.mxu0 %v179
    %335 = vmatmul.mubr.f32.gmra.mxu0 %v178
    %v336 = vpop.f32.mrf.mxu0
    %v337 = vadd.f32 %v251, %v336
    %v338 = vpop.f32.mrf.mxu0
    %v339 = vadd.f32 %v255, %v338
    %340 = vmatprep.mubr.f32.mxu0 %v181
    %341 = vmatmul.mubr.f32.gmra.mxu0 %v180
    %v342 = vpop.f32.mrf.mxu0
    %v343 = vadd.f32 %v251, %v342
    %v344 = vpop.f32.mrf.mxu0
    %v345 = vadd.f32 %v255, %v344
    %346 = vdwg.mxu0
    %v347 = vmax.f32 %v325, 0.0
    %v348 = vmax.f32 %v327, 0.0
    %v349 = vmax.f32 %v331, 0.0
    %v350 = vmax.f32 %v333, 0.0
    %v351 = vmax.f32 %v337, 0.0
    %v352 = vmax.f32 %v339, 0.0
    %v353 = vmax.f32 %v343, 0.0
    %v354 = vmax.f32 %v345, 0.0
    %v355 = vld [vmem:[#allocation4] sm:$0xff]
    %v356 = vld [vmem:[#allocation4 + $0x8] sm:$0xff]
    %v357 = vld [vmem:[#allocation4 + $0x10] sm:$0xff]
    %v358 = vld [vmem:[#allocation4 + $0x18] sm:$0xff]
    %v359 = vld [vmem:[#allocation4 + $0x20] sm:$0xff]
    %v360 = vld [vmem:[#allocation4 + $0x28] sm:$0xff]
    %v361 = vld [vmem:[#allocation4 + $0x30] sm:$0xff]
    %v362 = vld [vmem:[#allocation4 + $0x38] sm:$0xff]
    %v363 = vld [vmem:[#allocation4 + $0x40] sm:$0xff]
    %v364 = vld [vmem:[#allocation4 + $0x48] sm:$0xff]
    %v365 = vld [vmem:[#allocation4 + $0x50] sm:$0xff]
    %v366 = vld [vmem:[#allocation4 + $0x58] sm:$0xff]
    %v367 = vld [vmem:[#allocation4 + $0x60] sm:$0xff]
    %v368 = vld [vmem:[#allocation4 + $0x68] sm:$0xff]
    %v369 = vld [vmem:[#allocation4 + $0x70] sm:$0xff]
    %v370 = vld [vmem:[#allocation4 + $0x78] sm:$0xff]
    %v371 = vld [vmem:[#allocation4 + $0x80] sm:$0xff]
    %v372 = vld [vmem:[#allocation4 + $0x88] sm:$0xff]
    %v373 = vld [vmem:[#allocation4 + $0x90] sm:$0xff]
    %v374 = vld [vmem:[#allocation4 + $0x98] sm:$0xff]
    %v375 = vld [vmem:[#allocation4 + $0xa0] sm:$0xff]
    %v376 = vld [vmem:[#allocation4 + $0xa8] sm:$0xff]
    %v377 = vld [vmem:[#allocation4 + $0xb0] sm:$0xff]
    %v378 = vld [vmem:[#allocation4 + $0xb8] sm:$0xff]
    %v379 = vld [vmem:[#allocation4 + $0xc0] sm:$0xff]
    %v380 = vld [vmem:[#allocation4 + $0xc8] sm:$0xff]
    %v381 = vld [vmem:[#allocation4 + $0xd0] sm:$0xff]
    %v382 = vld [vmem:[#allocation4 + $0xd8] sm:$0xff]
    %v383 = vld [vmem:[#allocation4 + $0xe0] sm:$0xff]
    %v384 = vld [vmem:[#allocation4 + $0xe8] sm:$0xff]
    %v385 = vld [vmem:[#allocation4 + $0xf0] sm:$0xff]
    %v386 = vld [vmem:[#allocation4 + $0xf8] sm:$0xff]
    %v387 = vld [vmem:[%s6] sm:$0x1]
    %v389 = vlaneseq
    %v390 = vshrl.u32 %v389, 7
    %v391 = vsub.s32 0, %v390
    %v392 = vrot.slane %v387, %v391
    %394 = vmatprep.subr.mxu0 0.0
    %395 = vmatpush1.msra.mxu0 %v370
    %396 = vmatprep.subr.mxu0 0.0
    %397 = vmatpush1.msra.mxu0 %v369
    %398 = vmatprep.subr.mxu0 0.0
    %399 = vmatpush1.msra.mxu0 %v368
    %400 = vmatprep.subr.mxu0 0.0
    %401 = vmatpush1.msra.mxu0 %v367
    %402 = vmatprep.subr.mxu0 0.0
    %403 = vmatpush1.msra.mxu0 %v366
    %404 = vmatprep.subr.mxu0 0.0
    %405 = vmatpush1.msra.mxu0 %v365
    %406 = vmatprep.subr.mxu0 0.0
    %407 = vmatpush1.msra.mxu0 %v364
    %408 = vmatprep.subr.mxu0 0.0
    %409 = vmatpush1.msra.mxu0 %v363
    %410 = vmatprep.subr.mxu0 0.0
    %411 = vmatpush1.msra.mxu0 %v362
    %412 = vmatprep.subr.mxu0 0.0
    %413 = vmatpush1.msra.mxu0 %v361
    %414 = vmatprep.subr.mxu0 0.0
    %415 = vmatpush1.msra.mxu0 %v360
    %416 = vmatprep.subr.mxu0 0.0
    %417 = vmatpush1.msra.mxu0 %v359
    %418 = vmatprep.subr.mxu0 0.0
    %419 = vmatpush1.msra.mxu0 %v358
    %420 = vmatprep.subr.mxu0 0.0
    %421 = vmatpush1.msra.mxu0 %v357
    %422 = vmatprep.subr.mxu0 0.0
    %423 = vmatpush1.msra.mxu0 %v356
    %424 = vmatprep.subr.mxu0 0.0
    %425 = vmatpush1.msra.mxu0 %v355
    %426 = vmatprep.subr.mxu0 0.0
    %427 = vmatpush2.msra.mxu0 %v386
    %428 = vmatprep.subr.mxu0 0.0
    %429 = vmatpush2.msra.mxu0 %v385
    %430 = vmatprep.subr.mxu0 0.0
    %431 = vmatpush2.msra.mxu0 %v384
    %432 = vmatprep.subr.mxu0 0.0
    %433 = vmatpush2.msra.mxu0 %v383
    %434 = vmatprep.subr.mxu0 0.0
    %435 = vmatpush2.msra.mxu0 %v382
    %436 = vmatprep.subr.mxu0 0.0
    %437 = vmatpush2.msra.mxu0 %v381
    %438 = vmatprep.subr.mxu0 0.0
    %439 = vmatpush2.msra.mxu0 %v380
    %440 = vmatprep.subr.mxu0 0.0
    %441 = vmatpush2.msra.mxu0 %v379
    %442 = vmatprep.subr.mxu0 0.0
    %443 = vmatpush2.msra.mxu0 %v378
    %444 = vmatprep.subr.mxu0 0.0
    %445 = vmatpush2.msra.mxu0 %v377
    %446 = vmatprep.subr.mxu0 0.0
    %447 = vmatpush2.msra.mxu0 %v376
    %448 = vmatprep.subr.mxu0 0.0
    %449 = vmatpush2.msra.mxu0 %v375
    %450 = vmatprep.subr.mxu0 0.0
    %451 = vmatpush2.msra.mxu0 %v374
    %452 = vmatprep.subr.mxu0 0.0
    %453 = vmatpush2.msra.mxu0 %v373
    %454 = vmatprep.subr.mxu0 0.0
    %455 = vmatpush2.msra.mxu0 %v372
    %456 = vmatprep.subr.mxu0 0.0
    %457 = vmatpush2.msra.mxu0 %v371
    %458 = vmatprep.mubr.f32.mxu0 %v348
    %459 = vmatmul.mubr.f32.gmra.mxu0 %v347
    %v460 = vpop.f32.mrf.mxu0
    %v461 = vadd.f32 %v392, %v460
    %v462 = vpop.f32.mrf.mxu0
    %463 = vmatprep.mubr.f32.mxu0 %v350
    %464 = vmatmul.mubr.f32.gmra.mxu0 %v349
    %v465 = vpop.f32.mrf.mxu0
    %v466 = vadd.f32 %v392, %v465
    %v467 = vpop.f32.mrf.mxu0
    %468 = vmatprep.mubr.f32.mxu0 %v352
    %469 = vmatmul.mubr.f32.gmra.mxu0 %v351
    %v470 = vpop.f32.mrf.mxu0
    %v471 = vadd.f32 %v392, %v470
    %v472 = vpop.f32.mrf.mxu0
    %473 = vmatprep.mubr.f32.mxu0 %v354
    %474 = vmatmul.mubr.f32.gmra.mxu0 %v353
    %v475 = vpop.f32.mrf.mxu0
    %v476 = vadd.f32 %v392, %v475
    %v477 = vpop.f32.mrf.mxu0
    %478 = vdwg.mxu0
    %479 = vmax.xlane.f32.xlu0 %v461
    %v480 = vpop.xlane.xlu0 %479
    %481 = vmax.xlane.f32.xlu0 %v466
    %v482 = vpop.xlane.xlu0 %481
    %483 = vmax.xlane.f32.xlu0 %v471
    %v484 = vpop.xlane.xlu0 %483
    %485 = vmax.xlane.f32.xlu0 %v476
    %v486 = vpop.xlane.xlu0 %485
    %v487 = vsub.f32 %v461, %v480
    %v488 = vsub.f32 %v466, %v482
    %v489 = vsub.f32 %v471, %v484
    %v490 = vsub.f32 %v476, %v486
    %v491 = vmul.f32 %v487, 1.442695
    %v492 = vpow.pop %v491
    %v493 = vmul.f32 %v488, 1.442695
    %v494 = vpow.pop %v493
    %v495 = vmul.f32 %v489, 1.442695
    %v496 = vpow.pop %v495
    %v497 = vmul.f32 %v490, 1.442695
    %v498 = vpow.pop %v497
    %499 = vadd.xlane.f32.xlu0 %v492
    %v500 = vpop.xlane.xlu0 %499
    %501 = vadd.xlane.f32.xlu0 %v494
    %v502 = vpop.xlane.xlu0 %501
    %503 = vadd.xlane.f32.xlu0 %v496
    %v504 = vpop.xlane.xlu0 %503
    %505 = vadd.xlane.f32.xlu0 %v498
    %v506 = vpop.xlane.xlu0 %505
    %v507 = vrcp.pop %v500
    %v508 = vmul.f32 %v492, %v507
    %v509 = vrcp.pop %v502
    %v510 = vmul.f32 %v494, %v509
    %v511 = vrcp.pop %v504
    %v512 = vmul.f32 %v496, %v511
    %v513 = vrcp.pop %v506
    %v514 = vmul.f32 %v498, %v513
    %515 = vst [vmem:[%s7] sm:$0xff] %v508
    %516 = vst [vmem:[%s7 + $0x8] sm:$0xff] %v510
    %517 = vst [vmem:[%s7 + $0x10] sm:$0xff] %v512
    %518 = vst [vmem:[%s7 + $0x18] sm:$0xff] %v514
    // Predicated region
    $region38: #{dqn_forward.1} parent=1 // pred_check
      _
    $region39: #{dqn_forward.1} parent=1 // pred_check_branch
      %520 = sbr.rel (0) target = $region41
    $region40: #{dqn_forward.1} parent=1 // pred_region
      _
    $region41: #{dqn_forward.1} parent=1 // pred_fallthru
      _
    // Predicated region
    $region42: #{dqn_forward.1} parent=1 // pred_check
      _
    $region43: #{dqn_forward.1} parent=1 // pred_check_branch
      %522 = sbr.rel (0) target = $region45
    $region44: #{dqn_forward.1} parent=1 // pred_region
      _
    $region45: #{dqn_forward.1} parent=1 // pred_fallthru
      _
    %523 = vsyncpa [#allocation3], 1
    %524 = vsyncpa [#allocation5], 1

</llo_original>
